<compile_context>
chip_gen: v7x
topology: tpu7x:2x2x1
jax: 0.10.0
libtpu: 0.0.40
codegen_flags: <defaults>
</compile_context>

<pallas_src>
import functools

import jax
import jax.numpy as jnp
from jax.experimental import pallas as pl
from jax.experimental.pallas import tpu as pltpu


_MAX_TILE = 8192    # lanes per grid step (per-step VMEM stays ~hundreds of KB)
_CHUNK = 512        # register-blocking sub-chunk width (lanes) inside the kernel


def _pinn_kernel(xt_ref,            # (in_dim, tile_n)
                 w1_ref, b1_ref,    # (H, in_dim), (H, 1)
                 wh_ref, bh_ref,    # (n_hidden*H, H), (n_hidden*H, 1)
                 w5_ref, b5_ref,    # (out_dim, H), (out_dim, 1)
                 out_ref,           # (out_dim, tile_n)
                 *, bf16_tanh=False):
    H = w1_ref.shape[0]
    out_dim = w5_ref.shape[0]
    n_hidden = wh_ref.shape[0] // H
    tile_n = xt_ref.shape[1]

    # Largest lane-multiple chunk (<= _CHUNK) that divides the tile.
    if tile_n <= _CHUNK:
        chunk = tile_n
    else:
        chunk = max(c for c in (512, 384, 256, 128) if tile_n % c == 0)
    n_chunks = tile_n // chunk

    def act(z):
        if bf16_tanh:
            # v6e/v7x only: bf16-capable EUP ~doubles tanh throughput.
            return jnp.tanh(z.astype(jnp.bfloat16)).astype(jnp.float32)
        return jnp.tanh(z)

    # Hoist weight loads (sublane-aligned row slices) and bias lane-broadcasts
    # out of the chunk loop so they are materialized exactly once.
    w1 = w1_ref[...]
    w5 = w5_ref[...]
    wh = [wh_ref[l * H:(l + 1) * H, :] for l in range(n_hidden)]
    b1 = jnp.broadcast_to(b1_ref[...], (H, chunk))
    bh = [jnp.broadcast_to(bh_ref[l * H:(l + 1) * H, :], (H, chunk))
          for l in range(n_hidden)]
    b5 = jnp.broadcast_to(b5_ref[...], (out_dim, chunk))

    def run_chunk(off):
        x = xt_ref[:, pl.ds(off, chunk)]
        # Layer 1: (H, in_dim) @ (in_dim, chunk) -> (H, chunk), lane-dense.
        h = act(jnp.dot(w1, x, preferred_element_type=jnp.float32) + b1)
        # Hidden layers: static unroll, activations stay in vregs.
        for l in range(n_hidden):
            h = act(jnp.dot(wh[l], h, preferred_element_type=jnp.float32)
                    + bh[l])
        # Output layer: (out_dim, H) @ (H, chunk), lane-dense store.
        out = jnp.dot(w5, h, preferred_element_type=jnp.float32) + b5
        out_ref[:, pl.ds(off, chunk)] = out.astype(out_ref.dtype)

    if n_chunks == 1:
        run_chunk(0)
    else:
        def body(c, carry):
            run_chunk(pl.multiple_of(c * chunk, chunk))
            return carry
        # Partial unroll: scheduler visibility without unbounded code size.
        jax.lax.fori_loop(0, n_chunks, body, 0, unroll=min(n_chunks, 8))


def _num_tensorcores():
    """v7x has 2 TensorCores per chip; v5e/v6e have 1 (best-effort query)."""
    try:
        kind = jax.devices()[0].device_kind.lower()
    except Exception:
        return 1
    return 2 if ("v7" in kind or "7x" in kind) else 1


def _pick_tile(n, n_cores):
    """Balanced lane-multiple tiles: at least one grid step per TensorCore,
    each tile <= _MAX_TILE; batch padded up to steps*tile (pad-to-tile rather
    than requiring the tile to divide the padded batch)."""
    n128 = max(128, -(-n // 128) * 128)
    steps = max(n_cores, -(-n128 // _MAX_TILE))
    tile = -(-n128 // (steps * 128)) * 128
    return tile, steps * tile, steps


def pinn_forward(x, t, params, *, bf16_tanh=False):
    """x, t: (N, 1) float32.  params: list of (W (out,in), b (out,)) in torch
    nn.Linear convention.  Returns (u, v), each (N, 1) float32."""
    N = x.shape[0]

    # Glue in plain JAX: feature-major input, (in_dim, N).
    xt = jnp.concatenate((x.T, t.T), axis=0).astype(jnp.float32)      # (2, N)

    tile, n_pad, _steps = _pick_tile(N, _num_tensorcores())
    if n_pad != N:
        xt = jnp.pad(xt, ((0, 0), (0, n_pad - N)))

    in_dim = xt.shape[0]
    H = params[0][0].shape[0]
    out_dim = params[-1][0].shape[0]

    # Pack parameters: first layer, sublane-stacked hidden layers, last layer.
    w1, b1 = params[0]
    w5, b5 = params[-1]
    hidden = params[1:-1]
    for (w, _) in hidden:
        assert w.shape == (H, H), "hidden layers must all be (H, H)"
    wh = jnp.concatenate([w for (w, _) in hidden], axis=0)            # (nh*H, H)
    bh = jnp.concatenate([b.reshape(H, 1) for (_, b) in hidden],
                         axis=0)                                      # (nh*H, 1)
    flat_args = (w1, b1.reshape(H, 1), wh, bh, w5, b5.reshape(out_dim, 1))

    # Weights/biases: one full-extent block each, resident across the grid
    # (constant index_map -> DMA'd once, never re-fetched).
    def const_spec(arr):
        return pl.BlockSpec(arr.shape, lambda i: (0, 0))
    weight_specs = [const_spec(a) for a in flat_args]

    grid = (n_pad // tile,)
    out = pl.pallas_call(
        functools.partial(_pinn_kernel, bf16_tanh=bf16_tanh),
        out_shape=jax.ShapeDtypeStruct((out_dim, n_pad), jnp.float32),
        grid_spec=pltpu.PrefetchScalarGridSpec(
            num_scalar_prefetch=0,
            grid=grid,
            in_specs=[pl.BlockSpec((in_dim, tile), lambda i: (0, i))]
                     + weight_specs,
            out_specs=pl.BlockSpec((out_dim, tile), lambda i: (0, i)),
        ),
        # "parallel" shards the batch axis across TensorCores on 2-TC chips.
        compiler_params=pltpu.CompilerParams(
            dimension_semantics=("parallel",)),
    )(xt, *flat_args)

    # Rows of the (out_dim, n_pad) result are u and v; drop batch padding.
    u = out[0, :N].reshape(N, 1)
    v = out[1, :N].reshape(N, 1)
    return u, v


def init_pinn_params(layers, key):
    """nn.Linear-style params: W (out, in) Xavier-normal (gain=5/3), b zeros —
    matches PINN.init_bias()."""
    gain = 5.0 / 3.0
    params = []
    for fan_in, fan_out in zip(layers[:-1], layers[1:]):
        key, sub = jax.random.split(key)
        std = gain * (2.0 / (fan_in + fan_out)) ** 0.5
        w = std * jax.random.normal(sub, (fan_out, fan_in), dtype=jnp.float32)
        b = jnp.zeros((fan_out,), dtype=jnp.float32)
        params.append((w, b))
    return params


if __name__ == "__main__":
    key = jax.random.PRNGKey(0)
    layers = [2, 32, 32, 32, 32, 2]        # small Schrodinger-PINN config
    N = 256                                # batch of collocation points

    kp, kx, kt = jax.random.split(key, 3)
    params = init_pinn_params(layers, kp)
    x = jax.random.normal(kx, (N, 1), dtype=jnp.float32)
    t = jax.random.normal(kt, (N, 1), dtype=jnp.float32)

    u, v = pinn_forward(x, t, params)      # tile auto-picked (core-count aware)
    jax.block_until_ready((u, v))

    # Sanity check against a pure-JAX reference (torch convention: h @ W.T + b).
    def ref(x, t, params):
        h = jnp.concatenate((x, t), axis=1)
        for i, (w, b) in enumerate(params):
            h = h @ w.T + b
            if i < len(params) - 1:
                h = jnp.tanh(h)
        return h[:, 0:1], h[:, 1:2]

    u_ref, v_ref = ref(x, t, params)
    assert u.shape == (N, 1) and v.shape == (N, 1)
    assert jnp.allclose(u, u_ref, atol=1e-4, rtol=1e-4)
    assert jnp.allclose(v, v_ref, atol=1e-4, rtol=1e-4)

    print("KERNEL_OK")
</pallas_src>

<mosaic_0001>
module attributes {stable_mosaic.version = 11 : i64} {
  func.func @_pinn_kernel(%arg0: i32, %arg1: memref<2x256xf32, #tpu.memory_space<vmem>>, %arg2: memref<32x2xf32, #tpu.memory_space<vmem>>, %arg3: memref<32x1xf32, #tpu.memory_space<vmem>>, %arg4: memref<96x32xf32, #tpu.memory_space<vmem>>, %arg5: memref<96x1xf32, #tpu.memory_space<vmem>>, %arg6: memref<2x32xf32, #tpu.memory_space<vmem>>, %arg7: memref<2x1xf32, #tpu.memory_space<vmem>>, %arg8: memref<2x256xf32, #tpu.memory_space<vmem>>) attributes {dimension_semantics = [#tpu.dimension_semantics<parallel>], iteration_bounds = array<i64: 1>, scalar_prefetch = 0 : i64, scratch_operands = 0 : i64, tpu.core_type = #tpu.core_type<tc>, window_params = [{transform_indices = @transform_0, window_bounds = array<i64: 2, 256>}, {pipeline_mode = #tpu.pipeline_mode<synchronous>, transform_indices = @transform_1, window_bounds = array<i64: 32, 2>}, {pipeline_mode = #tpu.pipeline_mode<synchronous>, transform_indices = @transform_2, window_bounds = array<i64: 32, 1>}, {pipeline_mode = #tpu.pipeline_mode<synchronous>, transform_indices = @transform_3, window_bounds = array<i64: 96, 32>}, {pipeline_mode = #tpu.pipeline_mode<synchronous>, transform_indices = @transform_4, window_bounds = array<i64: 96, 1>}, {pipeline_mode = #tpu.pipeline_mode<synchronous>, transform_indices = @transform_5, window_bounds = array<i64: 2, 32>}, {pipeline_mode = #tpu.pipeline_mode<synchronous>, transform_indices = @transform_6, window_bounds = array<i64: 2, 1>}, {transform_indices = @transform_7, window_bounds = array<i64: 2, 256>}]} {
    %c0 = arith.constant 0 : index
    %c0_0 = arith.constant 0 : index
    %0 = vector.load %arg2[%c0, %c0_0] : memref<32x2xf32, #tpu.memory_space<vmem>>, vector<32x2xf32>
    %c0_1 = arith.constant 0 : index
    %c0_2 = arith.constant 0 : index
    %1 = vector.load %arg6[%c0_1, %c0_2] : memref<2x32xf32, #tpu.memory_space<vmem>>, vector<2x32xf32>
    %c0_3 = arith.constant 0 : index
    %c0_4 = arith.constant 0 : index
    %2 = vector.load %arg4[%c0_3, %c0_4] : memref<96x32xf32, #tpu.memory_space<vmem>>, vector<32x32xf32>
    %c32 = arith.constant 32 : index
    %c0_5 = arith.constant 0 : index
    %3 = vector.load %arg4[%c32, %c0_5] : memref<96x32xf32, #tpu.memory_space<vmem>>, vector<32x32xf32>
    %c64 = arith.constant 64 : index
    %c0_6 = arith.constant 0 : index
    %4 = vector.load %arg4[%c64, %c0_6] : memref<96x32xf32, #tpu.memory_space<vmem>>, vector<32x32xf32>
    %c0_7 = arith.constant 0 : index
    %c0_8 = arith.constant 0 : index
    %5 = vector.load %arg3[%c0_7, %c0_8] : memref<32x1xf32, #tpu.memory_space<vmem>>, vector<32x1xf32>
    %6 = vector.shape_cast %5 : vector<32x1xf32> to vector<32x1xf32>
    %7 = vector.broadcast %6 : vector<32x1xf32> to vector<32x256xf32>
    %c0_9 = arith.constant 0 : index
    %c0_10 = arith.constant 0 : index
    %8 = vector.load %arg5[%c0_9, %c0_10] : memref<96x1xf32, #tpu.memory_space<vmem>>, vector<32x1xf32>
    %9 = vector.shape_cast %8 : vector<32x1xf32> to vector<32x1xf32>
    %10 = vector.broadcast %9 : vector<32x1xf32> to vector<32x256xf32>
    %c32_11 = arith.constant 32 : index
    %c0_12 = arith.constant 0 : index
    %11 = vector.load %arg5[%c32_11, %c0_12] : memref<96x1xf32, #tpu.memory_space<vmem>>, vector<32x1xf32>
    %12 = vector.shape_cast %11 : vector<32x1xf32> to vector<32x1xf32>
    %13 = vector.broadcast %12 : vector<32x1xf32> to vector<32x256xf32>
    %c64_13 = arith.constant 64 : index
    %c0_14 = arith.constant 0 : index
    %14 = vector.load %arg5[%c64_13, %c0_14] : memref<96x1xf32, #tpu.memory_space<vmem>>, vector<32x1xf32>
    %15 = vector.shape_cast %14 : vector<32x1xf32> to vector<32x1xf32>
    %16 = vector.broadcast %15 : vector<32x1xf32> to vector<32x256xf32>
    %c0_15 = arith.constant 0 : index
    %c0_16 = arith.constant 0 : index
    %17 = vector.load %arg7[%c0_15, %c0_16] : memref<2x1xf32, #tpu.memory_space<vmem>>, vector<2x1xf32>
    %18 = vector.shape_cast %17 : vector<2x1xf32> to vector<2x1xf32>
    %19 = vector.broadcast %18 : vector<2x1xf32> to vector<2x256xf32>
    %c0_17 = arith.constant 0 : index
    %c0_18 = arith.constant 0 : index
    %20 = vector.load %arg1[%c0_17, %c0_18] : memref<2x256xf32, #tpu.memory_space<vmem>>, vector<2x256xf32>
    %cst = arith.constant dense<0.000000e+00> : vector<32x256xf32>
    %21 = tpu.matmul %0, %20, %cst {dimension_numbers = #tpu.dot_dimension_numbers<[1], [0], [0], [1], [0, 0, 1, 1], [], []>} : vector<32x2xf32>, vector<2x256xf32>, vector<32x256xf32> -> vector<32x256xf32>
    %22 = arith.addf %21, %7 : vector<32x256xf32>
    %23 = math.tanh %22 : vector<32x256xf32>
    %cst_19 = arith.constant dense<0.000000e+00> : vector<32x256xf32>
    %24 = tpu.matmul %2, %23, %cst_19 {dimension_numbers = #tpu.dot_dimension_numbers<[1], [0], [0], [1], [0, 0, 1, 1], [], []>} : vector<32x32xf32>, vector<32x256xf32>, vector<32x256xf32> -> vector<32x256xf32>
    %25 = arith.addf %24, %10 : vector<32x256xf32>
    %26 = math.tanh %25 : vector<32x256xf32>
    %cst_20 = arith.constant dense<0.000000e+00> : vector<32x256xf32>
    %27 = tpu.matmul %3, %26, %cst_20 {dimension_numbers = #tpu.dot_dimension_numbers<[1], [0], [0], [1], [0, 0, 1, 1], [], []>} : vector<32x32xf32>, vector<32x256xf32>, vector<32x256xf32> -> vector<32x256xf32>
    %28 = arith.addf %27, %13 : vector<32x256xf32>
    %29 = math.tanh %28 : vector<32x256xf32>
    %cst_21 = arith.constant dense<0.000000e+00> : vector<32x256xf32>
    %30 = tpu.matmul %4, %29, %cst_21 {dimension_numbers = #tpu.dot_dimension_numbers<[1], [0], [0], [1], [0, 0, 1, 1], [], []>} : vector<32x32xf32>, vector<32x256xf32>, vector<32x256xf32> -> vector<32x256xf32>
    %31 = arith.addf %30, %16 : vector<32x256xf32>
    %32 = math.tanh %31 : vector<32x256xf32>
    %cst_22 = arith.constant dense<0.000000e+00> : vector<2x256xf32>
    %33 = tpu.matmul %1, %32, %cst_22 {dimension_numbers = #tpu.dot_dimension_numbers<[1], [0], [0], [1], [0, 0, 1, 1], [], []>} : vector<2x32xf32>, vector<32x256xf32>, vector<2x256xf32> -> vector<2x256xf32>
    %34 = arith.addf %33, %19 : vector<2x256xf32>
    %c0_23 = arith.constant 0 : index
    %c0_24 = arith.constant 0 : index
    %35 = vector.load %arg8[%c0_23, %c0_24] : memref<2x256xf32, #tpu.memory_space<vmem>>, vector<2x256xf32>
    tpu.vector_store %arg8[%c0_23, %c0_24], %34 {strides = array<i32>} : memref<2x256xf32, #tpu.memory_space<vmem>>, vector<2x256xf32>,
    return
  }
  func.func @transform_0(%arg0: i32) -> (i32, i32) {
    %c0_i32 = arith.constant 0 : i32
    %c0_i32_0 = arith.constant 0 : i32
    return %c0_i32, %arg0 : i32, i32
  }
  func.func @transform_1(%arg0: i32) -> (i32, i32) {
    %c0_i32 = arith.constant 0 : i32
    %c0_i32_0 = arith.constant 0 : i32
    %c0_i32_1 = arith.constant 0 : i32
    return %c0_i32, %c0_i32_0 : i32, i32
  }
  func.func @transform_2(%arg0: i32) -> (i32, i32) {
    %c0_i32 = arith.constant 0 : i32
    %c0_i32_0 = arith.constant 0 : i32
    %c0_i32_1 = arith.constant 0 : i32
    return %c0_i32, %c0_i32_0 : i32, i32
  }
  func.func @transform_3(%arg0: i32) -> (i32, i32) {
    %c0_i32 = arith.constant 0 : i32
    %c0_i32_0 = arith.constant 0 : i32
    %c0_i32_1 = arith.constant 0 : i32
    return %c0_i32, %c0_i32_0 : i32, i32
  }
  func.func @transform_4(%arg0: i32) -> (i32, i32) {
    %c0_i32 = arith.constant 0 : i32
    %c0_i32_0 = arith.constant 0 : i32
    %c0_i32_1 = arith.constant 0 : i32
    return %c0_i32, %c0_i32_0 : i32, i32
  }
  func.func @transform_5(%arg0: i32) -> (i32, i32) {
    %c0_i32 = arith.constant 0 : i32
    %c0_i32_0 = arith.constant 0 : i32
    %c0_i32_1 = arith.constant 0 : i32
    return %c0_i32, %c0_i32_0 : i32, i32
  }
  func.func @transform_6(%arg0: i32) -> (i32, i32) {
    %c0_i32 = arith.constant 0 : i32
    %c0_i32_0 = arith.constant 0 : i32
    %c0_i32_1 = arith.constant 0 : i32
    return %c0_i32, %c0_i32_0 : i32, i32
  }
  func.func @transform_7(%arg0: i32) -> (i32, i32) {
    %c0_i32 = arith.constant 0 : i32
    %c0_i32_0 = arith.constant 0 : i32
    return %c0_i32, %arg0 : i32, i32
  }
}

</mosaic_0001>

<llo_original>
// kernel: tpu_custom_call.1
$region0: #{tpu_custom_call.1}
  #allocation0 [shape = 'u32[]', space=smem, size = 0x4, offset = 0x4, fixed_abs, tag = 'smem constant byte address 0x4 - core index']
  #allocation1 [shape = 'u32[144,128]{1,0:T(1,128)}', space=vmem, size = 0x12000, scoped, tag = 'internal scratch']
  %s0 = inlined_call_operand.vmem [shape: f32[2,256], index: 0, kind: input, shape index: {}]
  %s1 = inlined_call_operand.vmem [shape: f32[32,2], index: 1, kind: input, shape index: {}]
  %s2 = inlined_call_operand.vmem [shape: f32[32,1], index: 2, kind: input, shape index: {}]
  %s3 = inlined_call_operand.vmem [shape: f32[96,32], index: 3, kind: input, shape index: {}]
  %s4 = inlined_call_operand.vmem [shape: f32[96,1], index: 4, kind: input, shape index: {}]
  %s5 = inlined_call_operand.vmem [shape: f32[2,32], index: 5, kind: input, shape index: {}]
  %s6 = inlined_call_operand.vmem [shape: f32[2,1], index: 6, kind: input, shape index: {}]
  %s7 = inlined_call_operand.hbm [shape: f32[2,256], index: 7, kind: output, shape index: {}]
  %s8 = sld [smem:[#allocation0]]
  $region38: #{tpu_custom_call.1} parent=0
    _
  %s10 = ssub.s32 1, %s8
  %s11 = scalar_select 0, %s10, %s8
  $region1: #{tpu_custom_call.1} parent=0
    #allocation2 [shape = 'u8[2048]{0}', space=vmem, size = 0x800, scoped, tag = 'output window, operand 0, single buffered']
    #allocation3 [shape = 's32[1]{0}', space=sflag, size = 0x4, scoped, tag = 'scoped memory for tpu_custom_call.1']
    %12 = vsyncpa [#allocation3], 0
    // Predicated region
    $region2: #{tpu_custom_call.1} parent=1 // pred_check
      _
    $region3: #{tpu_custom_call.1} parent=1 // pred_check_branch
      %14 = sbr.rel (0) target = $region5
    $region4: #{tpu_custom_call.1} parent=1 // pred_region
      _
    $region5: #{tpu_custom_call.1} parent=1 // pred_fallthru
      _
    // Predicated region
    $region6: #{tpu_custom_call.1} parent=1 // pred_check
      _
    $region7: #{tpu_custom_call.1} parent=1 // pred_check_branch
      %16 = sbr.rel (0) target = $region9
    $region8: #{tpu_custom_call.1} parent=1 // pred_region
      _
    $region9: #{tpu_custom_call.1} parent=1 // pred_fallthru
      _
    // Predicated region
    $region10: #{tpu_custom_call.1} parent=1 // pred_check
      _
    $region11: #{tpu_custom_call.1} parent=1 // pred_check_branch
      %18 = sbr.rel (0) target = $region13
    $region12: #{tpu_custom_call.1} parent=1 // pred_region
      _
    $region13: #{tpu_custom_call.1} parent=1 // pred_fallthru
      _
    // Predicated region
    $region14: #{tpu_custom_call.1} parent=1 // pred_check
      _
    $region15: #{tpu_custom_call.1} parent=1 // pred_check_branch
      %20 = sbr.rel (0) target = $region17
    $region16: #{tpu_custom_call.1} parent=1 // pred_region
      _
    $region17: #{tpu_custom_call.1} parent=1 // pred_fallthru
      _
    // Predicated region
    $region18: #{tpu_custom_call.1} parent=1 // pred_check
      _
    $region19: #{tpu_custom_call.1} parent=1 // pred_check_branch
      %22 = sbr.rel (0) target = $region21
    $region20: #{tpu_custom_call.1} parent=1 // pred_region
      _
    $region21: #{tpu_custom_call.1} parent=1 // pred_fallthru
      _
    // Predicated region
    $region22: #{tpu_custom_call.1} parent=1 // pred_check
      _
    $region23: #{tpu_custom_call.1} parent=1 // pred_check_branch
      %24 = sbr.rel (0) target = $region25
    $region24: #{tpu_custom_call.1} parent=1 // pred_region
      _
    $region25: #{tpu_custom_call.1} parent=1 // pred_fallthru
      _
    // Predicated region
    $region26: #{tpu_custom_call.1} parent=1 // pred_check
      _
    $region27: #{tpu_custom_call.1} parent=1 // pred_check_branch
      %26 = sbr.rel (0) target = $region29
    $region28: #{tpu_custom_call.1} parent=1 // pred_region
      _
    $region29: #{tpu_custom_call.1} parent=1 // pred_fallthru
      _
    %v27 = vld [vmem:[%s1] sm:$0xff]
    %v28 = vld [vmem:[%s1 + $0x8] sm:$0xff]
    %v29 = vld [vmem:[%s1 + $0x10] sm:$0xff]
    %v30 = vld [vmem:[%s1 + $0x18] sm:$0xff]
    %v31 = vld [vmem:[%s5] sm:$0x3]
    %v32 = vld [vmem:[%s3] sm:$0xff]
    %v33 = vld [vmem:[%s3 + $0x8] sm:$0xff]
    %v34 = vld [vmem:[%s3 + $0x10] sm:$0xff]
    %v35 = vld [vmem:[%s3 + $0x18] sm:$0xff]
    %v36 = vld [vmem:[%s3 + $0x20] sm:$0xff]
    %v37 = vld [vmem:[%s3 + $0x28] sm:$0xff]
    %v38 = vld [vmem:[%s3 + $0x30] sm:$0xff]
    %v39 = vld [vmem:[%s3 + $0x38] sm:$0xff]
    %v40 = vld [vmem:[%s3 + $0x40] sm:$0xff]
    %v41 = vld [vmem:[%s3 + $0x48] sm:$0xff]
    %v42 = vld [vmem:[%s3 + $0x50] sm:$0xff]
    %v43 = vld [vmem:[%s3 + $0x58] sm:$0xff]
    %v44 = vld [vmem:[%s2] sm:$0xff]
    %v45 = vld [vmem:[%s2 + $0x8] sm:$0xff]
    %v46 = vld [vmem:[%s2 + $0x10] sm:$0xff]
    %v47 = vld [vmem:[%s2 + $0x18] sm:$0xff]
    %49 = vset.pattern.permute.xlu0 0
    %50 = vperm.xlu0 %49, %v44
    %v51 = vpop.permute.xlu0 %50
    %54 = vset.pattern.permute.xlu0 0
    %55 = vperm.xlu0 %54, %v45
    %v56 = vpop.permute.xlu0 %55
    %59 = vset.pattern.permute.xlu0 0
    %60 = vperm.xlu0 %59, %v46
    %v61 = vpop.permute.xlu0 %60
    %64 = vset.pattern.permute.xlu0 0
    %65 = vperm.xlu0 %64, %v47
    %v66 = vpop.permute.xlu0 %65
    %v68 = vld [vmem:[%s4] sm:$0xff]
    %v69 = vld [vmem:[%s4 + $0x8] sm:$0xff]
    %v70 = vld [vmem:[%s4 + $0x10] sm:$0xff]
    %v71 = vld [vmem:[%s4 + $0x18] sm:$0xff]
    %73 = vset.pattern.permute.xlu0 0
    %74 = vperm.xlu0 %73, %v68
    %v75 = vpop.permute.xlu0 %74
    %78 = vset.pattern.permute.xlu0 0
    %79 = vperm.xlu0 %78, %v69
    %v80 = vpop.permute.xlu0 %79
    %83 = vset.pattern.permute.xlu0 0
    %84 = vperm.xlu0 %83, %v70
    %v85 = vpop.permute.xlu0 %84
    %88 = vset.pattern.permute.xlu0 0
    %89 = vperm.xlu0 %88, %v71
    %v90 = vpop.permute.xlu0 %89
    %v92 = vld [vmem:[%s4 + $0x20] sm:$0xff]
    %v93 = vld [vmem:[%s4 + $0x28] sm:$0xff]
    %v94 = vld [vmem:[%s4 + $0x30] sm:$0xff]
    %v95 = vld [vmem:[%s4 + $0x38] sm:$0xff]
    %97 = vset.pattern.permute.xlu0 0
    %98 = vperm.xlu0 %97, %v92
    %v99 = vpop.permute.xlu0 %98
    %102 = vset.pattern.permute.xlu0 0
    %103 = vperm.xlu0 %102, %v93
    %v104 = vpop.permute.xlu0 %103
    %107 = vset.pattern.permute.xlu0 0
    %108 = vperm.xlu0 %107, %v94
    %v109 = vpop.permute.xlu0 %108
    %112 = vset.pattern.permute.xlu0 0
    %113 = vperm.xlu0 %112, %v95
    %v114 = vpop.permute.xlu0 %113
    %v116 = vld [vmem:[%s4 + $0x40] sm:$0xff]
    %v117 = vld [vmem:[%s4 + $0x48] sm:$0xff]
    %v118 = vld [vmem:[%s4 + $0x50] sm:$0xff]
    %v119 = vld [vmem:[%s4 + $0x58] sm:$0xff]
    %121 = vset.pattern.permute.xlu0 0
    %122 = vperm.xlu0 %121, %v116
    %v123 = vpop.permute.xlu0 %122
    %126 = vset.pattern.permute.xlu0 0
    %127 = vperm.xlu0 %126, %v117
    %v128 = vpop.permute.xlu0 %127
    %131 = vset.pattern.permute.xlu0 0
    %132 = vperm.xlu0 %131, %v118
    %v133 = vpop.permute.xlu0 %132
    %136 = vset.pattern.permute.xlu0 0
    %137 = vperm.xlu0 %136, %v119
    %v138 = vpop.permute.xlu0 %137
    %v140 = vld [vmem:[%s6] sm:$0x3]
    %142 = vset.pattern.permute.xlu0 0
    %143 = vperm.xlu0 %142, %v140
    %v144 = vpop.permute.xlu0 %143
    %v146 = vld [vmem:[%s0] sm:$0xf]
    %v149 = vunpack.c.l.s4 1983009808
    %v150 = vunpack.c.0.s8 %v149
    %v151 = vlaneseq
    %v152 = vshrl.u32 %v151, 7
    %v153 = vsub.s32 %v150, %v152
    %v154 = vrot.slane %v146, %v153
    %v155 = vcombine.high %v154, %v154
    %vm156 = vcmask 15360
    %v158 = vsel %vm156, %v27, 0
    %v161 = vsel %vm156, %v28, 0
    %v164 = vsel %vm156, %v29, 0
    %v167 = vsel %vm156, %v30, 0
    %vm169 = vcmask 1041408
    %v170 = vsel %vm169, %v154, 0
    %v172 = vsel %vm169, %v155, 0
    %174 = vmatprep.subr.mxu0 %v172
    %175 = vmatpush1.msra.mxu0 %v170
    %176 = vmatprep.subr.mxu0 0.0
    %177 = vmatpush1.msra.mxu0 0.0
    %178 = vmatprep.subr.mxu0 0.0
    %179 = vmatpush1.msra.mxu0 0.0
    %180 = vmatprep.subr.mxu0 0.0
    %181 = vmatpush1.msra.mxu0 0.0
    %182 = vmatprep.subr.mxu0 0.0
    %183 = vmatpush1.msra.mxu0 0.0
    %184 = vmatprep.subr.mxu0 0.0
    %185 = vmatpush1.msra.mxu0 0.0
    %186 = vmatprep.subr.mxu0 0.0
    %187 = vmatpush1.msra.mxu0 0.0
    %188 = vmatprep.subr.mxu0 0.0
    %189 = vmatpush1.msra.mxu0 0.0
    %190 = vmatprep.subr.mxu0 0.0
    %191 = vmatpush1.msra.mxu0 0.0
    %192 = vmatprep.subr.mxu0 0.0
    %193 = vmatpush1.msra.mxu0 0.0
    %194 = vmatprep.subr.mxu0 0.0
    %195 = vmatpush1.msra.mxu0 0.0
    %196 = vmatprep.subr.mxu0 0.0
    %197 = vmatpush1.msra.mxu0 0.0
    %198 = vmatprep.subr.mxu0 0.0
    %199 = vmatpush1.msra.mxu0 0.0
    %200 = vmatprep.subr.mxu0 0.0
    %201 = vmatpush1.msra.mxu0 0.0
    %202 = vmatprep.subr.mxu0 0.0
    %203 = vmatpush1.msra.mxu0 0.0
    %204 = vmatprep.subr.mxu0 0.0
    %205 = vmatpush1.msra.mxu0 0.0
    %206 = vmatprep.subr.mxu0 0.0
    %207 = vmatpush1.msra.mxu0 0.0
    %208 = vmatprep.subr.mxu0 0.0
    %209 = vmatpush1.msra.mxu0 0.0
    %210 = vmatprep.subr.mxu0 0.0
    %211 = vmatpush1.msra.mxu0 0.0
    %212 = vmatprep.subr.mxu0 0.0
    %213 = vmatpush1.msra.mxu0 0.0
    %214 = vmatprep.subr.mxu0 0.0
    %215 = vmatpush1.msra.mxu0 0.0
    %216 = vmatprep.subr.mxu0 0.0
    %217 = vmatpush1.msra.mxu0 0.0
    %218 = vmatprep.subr.mxu0 0.0
    %219 = vmatpush1.msra.mxu0 0.0
    %220 = vmatprep.subr.mxu0 0.0
    %221 = vmatpush1.msra.mxu0 0.0
    %222 = vmatprep.subr.mxu0 0.0
    %223 = vmatpush1.msra.mxu0 0.0
    %224 = vmatprep.subr.mxu0 0.0
    %225 = vmatpush1.msra.mxu0 0.0
    %226 = vmatprep.subr.mxu0 0.0
    %227 = vmatpush1.msra.mxu0 0.0
    %228 = vmatprep.subr.mxu0 0.0
    %229 = vmatpush1.msra.mxu0 0.0
    %230 = vmatprep.subr.mxu0 0.0
    %231 = vmatpush1.msra.mxu0 0.0
    %232 = vmatprep.subr.mxu0 0.0
    %233 = vmatpush1.msra.mxu0 0.0
    %234 = vmatprep.subr.mxu0 0.0
    %235 = vmatpush1.msra.mxu0 0.0
    %236 = vmatprep.subr.mxu0 0.0
    %237 = vmatpush1.msra.mxu0 0.0
    %238 = vmatprep.mubr.f32.mxu0 0.0
    %239 = vmatmul.mubr.f32.gmra.mrb[0].mxu0 %v158
    %v240 = vpop.f32.mrb[0].mxu0
    %v241 = vadd.f32 %v51, %v240
    %v242 = vpop.f32.mrb[0].mxu0
    %v243 = vadd.f32 %v51, %v242
    %244 = vmatprep.mubr.f32.mxu0 0.0
    %245 = vmatmul.mubr.f32.gmra.mrb[0].mxu0 %v161
    %v246 = vpop.f32.mrb[0].mxu0
    %v247 = vadd.f32 %v56, %v246
    %v248 = vpop.f32.mrb[0].mxu0
    %v249 = vadd.f32 %v56, %v248
    %250 = vmatprep.mubr.f32.mxu0 0.0
    %251 = vmatmul.mubr.f32.gmra.mrb[0].mxu0 %v164
    %v252 = vpop.f32.mrb[0].mxu0
    %v253 = vadd.f32 %v61, %v252
    %v254 = vpop.f32.mrb[0].mxu0
    %v255 = vadd.f32 %v61, %v254
    %256 = vmatprep.mubr.f32.mxu0 0.0
    %257 = vmatmul.mubr.f32.gmra.mrb[0].mxu0 %v167
    %v258 = vpop.f32.mrb[0].mxu0
    %v259 = vadd.f32 %v66, %v258
    %v260 = vpop.f32.mrb[0].mxu0
    %v261 = vadd.f32 %v66, %v260
    %262 = vdwg.mxu0
    %v263 = vtanh.pop %v241
    %v264 = vtanh.pop %v243
    %v265 = vtanh.pop %v247
    %v266 = vtanh.pop %v249
    %v267 = vtanh.pop %v253
    %v268 = vtanh.pop %v255
    %v269 = vtanh.pop %v259
    %v270 = vtanh.pop %v261
    %vm271 = vcmask 261120
    %v273 = vsel %vm271, %v32, 0
    %v276 = vsel %vm271, %v33, 0
    %v279 = vsel %vm271, %v34, 0
    %v282 = vsel %vm271, %v35, 0
    %284 = vmatprep.subr.mxu0 %v264
    %285 = vmatpush1.msra.mxu0 %v263
    %286 = vmatprep.subr.mxu0 %v266
    %287 = vmatpush1.msra.mxu0 %v265
    %288 = vmatprep.subr.mxu0 %v268
    %289 = vmatpush1.msra.mxu0 %v267
    %290 = vmatprep.subr.mxu0 %v270
    %291 = vmatpush1.msra.mxu0 %v269
    %292 = vmatprep.subr.mxu0 0.0
    %293 = vmatpush1.msra.mxu0 0.0
    %294 = vmatprep.subr.mxu0 0.0
    %295 = vmatpush1.msra.mxu0 0.0
    %296 = vmatprep.subr.mxu0 0.0
    %297 = vmatpush1.msra.mxu0 0.0
    %298 = vmatprep.subr.mxu0 0.0
    %299 = vmatpush1.msra.mxu0 0.0
    %300 = vmatprep.subr.mxu0 0.0
    %301 = vmatpush1.msra.mxu0 0.0
    %302 = vmatprep.subr.mxu0 0.0
    %303 = vmatpush1.msra.mxu0 0.0
    %304 = vmatprep.subr.mxu0 0.0
    %305 = vmatpush1.msra.mxu0 0.0
    %306 = vmatprep.subr.mxu0 0.0
    %307 = vmatpush1.msra.mxu0 0.0
    %308 = vmatprep.subr.mxu0 0.0
    %309 = vmatpush1.msra.mxu0 0.0
    %310 = vmatprep.subr.mxu0 0.0
    %311 = vmatpush1.msra.mxu0 0.0
    %312 = vmatprep.subr.mxu0 0.0
    %313 = vmatpush1.msra.mxu0 0.0
    %314 = vmatprep.subr.mxu0 0.0
    %315 = vmatpush1.msra.mxu0 0.0
    %316 = vmatprep.subr.mxu0 0.0
    %317 = vmatpush1.msra.mxu0 0.0
    %318 = vmatprep.subr.mxu0 0.0
    %319 = vmatpush1.msra.mxu0 0.0
    %320 = vmatprep.subr.mxu0 0.0
    %321 = vmatpush1.msra.mxu0 0.0
    %322 = vmatprep.subr.mxu0 0.0
    %323 = vmatpush1.msra.mxu0 0.0
    %324 = vmatprep.subr.mxu0 0.0
    %325 = vmatpush1.msra.mxu0 0.0
    %326 = vmatprep.subr.mxu0 0.0
    %327 = vmatpush1.msra.mxu0 0.0
    %328 = vmatprep.subr.mxu0 0.0
    %329 = vmatpush1.msra.mxu0 0.0
    %330 = vmatprep.subr.mxu0 0.0
    %331 = vmatpush1.msra.mxu0 0.0
    %332 = vmatprep.subr.mxu0 0.0
    %333 = vmatpush1.msra.mxu0 0.0
    %334 = vmatprep.subr.mxu0 0.0
    %335 = vmatpush1.msra.mxu0 0.0
    %336 = vmatprep.subr.mxu0 0.0
    %337 = vmatpush1.msra.mxu0 0.0
    %338 = vmatprep.subr.mxu0 0.0
    %339 = vmatpush1.msra.mxu0 0.0
    %340 = vmatprep.subr.mxu0 0.0
    %341 = vmatpush1.msra.mxu0 0.0
    %342 = vmatprep.subr.mxu0 0.0
    %343 = vmatpush1.msra.mxu0 0.0
    %344 = vmatprep.subr.mxu0 0.0
    %345 = vmatpush1.msra.mxu0 0.0
    %346 = vmatprep.subr.mxu0 0.0
    %347 = vmatpush1.msra.mxu0 0.0
    %348 = vmatprep.mubr.f32.mxu0 0.0
    %349 = vmatmul.mubr.f32.gmra.mrb[0].mxu0 %v273
    %v350 = vpop.f32.mrb[0].mxu0
    %v351 = vadd.f32 %v75, %v350
    %v352 = vpop.f32.mrb[0].mxu0
    %v353 = vadd.f32 %v75, %v352
    %354 = vmatprep.mubr.f32.mxu0 0.0
    %355 = vmatmul.mubr.f32.gmra.mrb[0].mxu0 %v276
    %v356 = vpop.f32.mrb[0].mxu0
    %v357 = vadd.f32 %v80, %v356
    %v358 = vpop.f32.mrb[0].mxu0
    %v359 = vadd.f32 %v80, %v358
    %360 = vmatprep.mubr.f32.mxu0 0.0
    %361 = vmatmul.mubr.f32.gmra.mrb[0].mxu0 %v279
    %v362 = vpop.f32.mrb[0].mxu0
    %v363 = vadd.f32 %v85, %v362
    %v364 = vpop.f32.mrb[0].mxu0
    %v365 = vadd.f32 %v85, %v364
    %366 = vmatprep.mubr.f32.mxu0 0.0
    %367 = vmatmul.mubr.f32.gmra.mrb[0].mxu0 %v282
    %v368 = vpop.f32.mrb[0].mxu0
    %v369 = vadd.f32 %v90, %v368
    %v370 = vpop.f32.mrb[0].mxu0
    %v371 = vadd.f32 %v90, %v370
    %372 = vdwg.mxu0
    %v373 = vtanh.pop %v351
    %v374 = vtanh.pop %v353
    %v375 = vtanh.pop %v357
    %v376 = vtanh.pop %v359
    %v377 = vtanh.pop %v363
    %v378 = vtanh.pop %v365
    %v379 = vtanh.pop %v369
    %v380 = vtanh.pop %v371
    %v382 = vsel %vm271, %v36, 0
    %v385 = vsel %vm271, %v37, 0
    %v388 = vsel %vm271, %v38, 0
    %v391 = vsel %vm271, %v39, 0
    %393 = vmatprep.subr.mxu0 %v374
    %394 = vmatpush1.msra.mxu0 %v373
    %395 = vmatprep.subr.mxu0 %v376
    %396 = vmatpush1.msra.mxu0 %v375
    %397 = vmatprep.subr.mxu0 %v378
    %398 = vmatpush1.msra.mxu0 %v377
    %399 = vmatprep.subr.mxu0 %v380
    %400 = vmatpush1.msra.mxu0 %v379
    %401 = vmatprep.subr.mxu0 0.0
    %402 = vmatpush1.msra.mxu0 0.0
    %403 = vmatprep.subr.mxu0 0.0
    %404 = vmatpush1.msra.mxu0 0.0
    %405 = vmatprep.subr.mxu0 0.0
    %406 = vmatpush1.msra.mxu0 0.0
    %407 = vmatprep.subr.mxu0 0.0
    %408 = vmatpush1.msra.mxu0 0.0
    %409 = vmatprep.subr.mxu0 0.0
    %410 = vmatpush1.msra.mxu0 0.0
    %411 = vmatprep.subr.mxu0 0.0
    %412 = vmatpush1.msra.mxu0 0.0
    %413 = vmatprep.subr.mxu0 0.0
    %414 = vmatpush1.msra.mxu0 0.0
    %415 = vmatprep.subr.mxu0 0.0
    %416 = vmatpush1.msra.mxu0 0.0
    %417 = vmatprep.subr.mxu0 0.0
    %418 = vmatpush1.msra.mxu0 0.0
    %419 = vmatprep.subr.mxu0 0.0
    %420 = vmatpush1.msra.mxu0 0.0
    %421 = vmatprep.subr.mxu0 0.0
    %422 = vmatpush1.msra.mxu0 0.0
    %423 = vmatprep.subr.mxu0 0.0
    %424 = vmatpush1.msra.mxu0 0.0
    %425 = vmatprep.subr.mxu0 0.0
    %426 = vmatpush1.msra.mxu0 0.0
    %427 = vmatprep.subr.mxu0 0.0
    %428 = vmatpush1.msra.mxu0 0.0
    %429 = vmatprep.subr.mxu0 0.0
    %430 = vmatpush1.msra.mxu0 0.0
    %431 = vmatprep.subr.mxu0 0.0
    %432 = vmatpush1.msra.mxu0 0.0
    %433 = vmatprep.subr.mxu0 0.0
    %434 = vmatpush1.msra.mxu0 0.0
    %435 = vmatprep.subr.mxu0 0.0
    %436 = vmatpush1.msra.mxu0 0.0
    %437 = vmatprep.subr.mxu0 0.0
    %438 = vmatpush1.msra.mxu0 0.0
    %439 = vmatprep.subr.mxu0 0.0
    %440 = vmatpush1.msra.mxu0 0.0
    %441 = vmatprep.subr.mxu0 0.0
    %442 = vmatpush1.msra.mxu0 0.0
    %443 = vmatprep.subr.mxu0 0.0
    %444 = vmatpush1.msra.mxu0 0.0
    %445 = vmatprep.subr.mxu0 0.0
    %446 = vmatpush1.msra.mxu0 0.0
    %447 = vmatprep.subr.mxu0 0.0
    %448 = vmatpush1.msra.mxu0 0.0
    %449 = vmatprep.subr.mxu0 0.0
    %450 = vmatpush1.msra.mxu0 0.0
    %451 = vmatprep.subr.mxu0 0.0
    %452 = vmatpush1.msra.mxu0 0.0
    %453 = vmatprep.subr.mxu0 0.0
    %454 = vmatpush1.msra.mxu0 0.0
    %455 = vmatprep.subr.mxu0 0.0
    %456 = vmatpush1.msra.mxu0 0.0
    %457 = vmatprep.mubr.f32.mxu0 0.0
    %458 = vmatmul.mubr.f32.gmra.mrb[0].mxu0 %v382
    %v459 = vpop.f32.mrb[0].mxu0
    %v460 = vadd.f32 %v99, %v459
    %v461 = vpop.f32.mrb[0].mxu0
    %v462 = vadd.f32 %v99, %v461
    %463 = vmatprep.mubr.f32.mxu0 0.0
    %464 = vmatmul.mubr.f32.gmra.mrb[0].mxu0 %v385
    %v465 = vpop.f32.mrb[0].mxu0
    %v466 = vadd.f32 %v104, %v465
    %v467 = vpop.f32.mrb[0].mxu0
    %v468 = vadd.f32 %v104, %v467
    %469 = vmatprep.mubr.f32.mxu0 0.0
    %470 = vmatmul.mubr.f32.gmra.mrb[0].mxu0 %v388
    %v471 = vpop.f32.mrb[0].mxu0
    %v472 = vadd.f32 %v109, %v471
    %v473 = vpop.f32.mrb[0].mxu0
    %v474 = vadd.f32 %v109, %v473
    %475 = vmatprep.mubr.f32.mxu0 0.0
    %476 = vmatmul.mubr.f32.gmra.mrb[0].mxu0 %v391
    %v477 = vpop.f32.mrb[0].mxu0
    %v478 = vadd.f32 %v114, %v477
    %v479 = vpop.f32.mrb[0].mxu0
    %v480 = vadd.f32 %v114, %v479
    %481 = vdwg.mxu0
    %v482 = vtanh.pop %v460
    %v483 = vtanh.pop %v462
    %v484 = vtanh.pop %v466
    %v485 = vtanh.pop %v468
    %v486 = vtanh.pop %v472
    %v487 = vtanh.pop %v474
    %v488 = vtanh.pop %v478
    %v489 = vtanh.pop %v480
    %v491 = vsel %vm271, %v40, 0
    %v494 = vsel %vm271, %v41, 0
    %v497 = vsel %vm271, %v42, 0
    %v500 = vsel %vm271, %v43, 0
    %502 = vmatprep.subr.mxu0 %v483
    %503 = vmatpush1.msra.mxu0 %v482
    %504 = vmatprep.subr.mxu0 %v485
    %505 = vmatpush1.msra.mxu0 %v484
    %506 = vmatprep.subr.mxu0 %v487
    %507 = vmatpush1.msra.mxu0 %v486
    %508 = vmatprep.subr.mxu0 %v489
    %509 = vmatpush1.msra.mxu0 %v488
    %510 = vmatprep.subr.mxu0 0.0
    %511 = vmatpush1.msra.mxu0 0.0
    %512 = vmatprep.subr.mxu0 0.0
    %513 = vmatpush1.msra.mxu0 0.0
    %514 = vmatprep.subr.mxu0 0.0
    %515 = vmatpush1.msra.mxu0 0.0
    %516 = vmatprep.subr.mxu0 0.0
    %517 = vmatpush1.msra.mxu0 0.0
    %518 = vmatprep.subr.mxu0 0.0
    %519 = vmatpush1.msra.mxu0 0.0
    %520 = vmatprep.subr.mxu0 0.0
    %521 = vmatpush1.msra.mxu0 0.0
    %522 = vmatprep.subr.mxu0 0.0
    %523 = vmatpush1.msra.mxu0 0.0
    %524 = vmatprep.subr.mxu0 0.0
    %525 = vmatpush1.msra.mxu0 0.0
    %526 = vmatprep.subr.mxu0 0.0
    %527 = vmatpush1.msra.mxu0 0.0
    %528 = vmatprep.subr.mxu0 0.0
    %529 = vmatpush1.msra.mxu0 0.0
    %530 = vmatprep.subr.mxu0 0.0
    %531 = vmatpush1.msra.mxu0 0.0
    %532 = vmatprep.subr.mxu0 0.0
    %533 = vmatpush1.msra.mxu0 0.0
    %534 = vmatprep.subr.mxu0 0.0
    %535 = vmatpush1.msra.mxu0 0.0
    %536 = vmatprep.subr.mxu0 0.0
    %537 = vmatpush1.msra.mxu0 0.0
    %538 = vmatprep.subr.mxu0 0.0
    %539 = vmatpush1.msra.mxu0 0.0
    %540 = vmatprep.subr.mxu0 0.0
    %541 = vmatpush1.msra.mxu0 0.0
    %542 = vmatprep.subr.mxu0 0.0
    %543 = vmatpush1.msra.mxu0 0.0
    %544 = vmatprep.subr.mxu0 0.0
    %545 = vmatpush1.msra.mxu0 0.0
    %546 = vmatprep.subr.mxu0 0.0
    %547 = vmatpush1.msra.mxu0 0.0
    %548 = vmatprep.subr.mxu0 0.0
    %549 = vmatpush1.msra.mxu0 0.0
    %550 = vmatprep.subr.mxu0 0.0
    %551 = vmatpush1.msra.mxu0 0.0
    %552 = vmatprep.subr.mxu0 0.0
    %553 = vmatpush1.msra.mxu0 0.0
    %554 = vmatprep.subr.mxu0 0.0
    %555 = vmatpush1.msra.mxu0 0.0
    %556 = vmatprep.subr.mxu0 0.0
    %557 = vmatpush1.msra.mxu0 0.0
    %558 = vmatprep.subr.mxu0 0.0
    %559 = vmatpush1.msra.mxu0 0.0
    %560 = vmatprep.subr.mxu0 0.0
    %561 = vmatpush1.msra.mxu0 0.0
    %562 = vmatprep.subr.mxu0 0.0
    %563 = vmatpush1.msra.mxu0 0.0
    %564 = vmatprep.subr.mxu0 0.0
    %565 = vmatpush1.msra.mxu0 0.0
    %566 = vmatprep.mubr.f32.mxu0 0.0
    %567 = vmatmul.mubr.f32.gmra.mrb[0].mxu0 %v491
    %v568 = vpop.f32.mrb[0].mxu0
    %v569 = vadd.f32 %v123, %v568
    %v570 = vpop.f32.mrb[0].mxu0
    %v571 = vadd.f32 %v123, %v570
    %572 = vmatprep.mubr.f32.mxu0 0.0
    %573 = vmatmul.mubr.f32.gmra.mrb[0].mxu0 %v494
    %v574 = vpop.f32.mrb[0].mxu0
    %v575 = vadd.f32 %v128, %v574
    %v576 = vpop.f32.mrb[0].mxu0
    %v577 = vadd.f32 %v128, %v576
    %578 = vmatprep.mubr.f32.mxu0 0.0
    %579 = vmatmul.mubr.f32.gmra.mrb[0].mxu0 %v497
    %v580 = vpop.f32.mrb[0].mxu0
    %v581 = vadd.f32 %v133, %v580
    %v582 = vpop.f32.mrb[0].mxu0
    %v583 = vadd.f32 %v133, %v582
    %584 = vmatprep.mubr.f32.mxu0 0.0
    %585 = vmatmul.mubr.f32.gmra.mrb[0].mxu0 %v500
    %v586 = vpop.f32.mrb[0].mxu0
    %v587 = vadd.f32 %v138, %v586
    %v588 = vpop.f32.mrb[0].mxu0
    %v589 = vadd.f32 %v138, %v588
    %590 = vdwg.mxu0
    %v591 = vtanh.pop %v569
    %v592 = vtanh.pop %v571
    %v593 = vtanh.pop %v575
    %v594 = vtanh.pop %v577
    %v595 = vtanh.pop %v581
    %v596 = vtanh.pop %v583
    %v597 = vtanh.pop %v587
    %v598 = vtanh.pop %v589
    %v600 = vsel %vm271, %v31, 0
    %602 = vmatprep.subr.mxu0 %v592
    %603 = vmatpush1.msra.mxu0 %v591
    %604 = vmatprep.subr.mxu0 %v594
    %605 = vmatpush1.msra.mxu0 %v593
    %606 = vmatprep.subr.mxu0 %v596
    %607 = vmatpush1.msra.mxu0 %v595
    %608 = vmatprep.subr.mxu0 %v598
    %609 = vmatpush1.msra.mxu0 %v597
    %610 = vmatprep.subr.mxu0 0.0
    %611 = vmatpush1.msra.mxu0 0.0
    %612 = vmatprep.subr.mxu0 0.0
    %613 = vmatpush1.msra.mxu0 0.0
    %614 = vmatprep.subr.mxu0 0.0
    %615 = vmatpush1.msra.mxu0 0.0
    %616 = vmatprep.subr.mxu0 0.0
    %617 = vmatpush1.msra.mxu0 0.0
    %618 = vmatprep.subr.mxu0 0.0
    %619 = vmatpush1.msra.mxu0 0.0
    %620 = vmatprep.subr.mxu0 0.0
    %621 = vmatpush1.msra.mxu0 0.0
    %622 = vmatprep.subr.mxu0 0.0
    %623 = vmatpush1.msra.mxu0 0.0
    %624 = vmatprep.subr.mxu0 0.0
    %625 = vmatpush1.msra.mxu0 0.0
    %626 = vmatprep.subr.mxu0 0.0
    %627 = vmatpush1.msra.mxu0 0.0
    %628 = vmatprep.subr.mxu0 0.0
    %629 = vmatpush1.msra.mxu0 0.0
    %630 = vmatprep.subr.mxu0 0.0
    %631 = vmatpush1.msra.mxu0 0.0
    %632 = vmatprep.subr.mxu0 0.0
    %633 = vmatpush1.msra.mxu0 0.0
    %634 = vmatprep.subr.mxu0 0.0
    %635 = vmatpush1.msra.mxu0 0.0
    %636 = vmatprep.subr.mxu0 0.0
    %637 = vmatpush1.msra.mxu0 0.0
    %638 = vmatprep.subr.mxu0 0.0
    %639 = vmatpush1.msra.mxu0 0.0
    %640 = vmatprep.subr.mxu0 0.0
    %641 = vmatpush1.msra.mxu0 0.0
    %642 = vmatprep.subr.mxu0 0.0
    %643 = vmatpush1.msra.mxu0 0.0
    %644 = vmatprep.subr.mxu0 0.0
    %645 = vmatpush1.msra.mxu0 0.0
    %646 = vmatprep.subr.mxu0 0.0
    %647 = vmatpush1.msra.mxu0 0.0
    %648 = vmatprep.subr.mxu0 0.0
    %649 = vmatpush1.msra.mxu0 0.0
    %650 = vmatprep.subr.mxu0 0.0
    %651 = vmatpush1.msra.mxu0 0.0
    %652 = vmatprep.subr.mxu0 0.0
    %653 = vmatpush1.msra.mxu0 0.0
    %654 = vmatprep.subr.mxu0 0.0
    %655 = vmatpush1.msra.mxu0 0.0
    %656 = vmatprep.subr.mxu0 0.0
    %657 = vmatpush1.msra.mxu0 0.0
    %658 = vmatprep.subr.mxu0 0.0
    %659 = vmatpush1.msra.mxu0 0.0
    %660 = vmatprep.subr.mxu0 0.0
    %661 = vmatpush1.msra.mxu0 0.0
    %662 = vmatprep.subr.mxu0 0.0
    %663 = vmatpush1.msra.mxu0 0.0
    %664 = vmatprep.subr.mxu0 0.0
    %665 = vmatpush1.msra.mxu0 0.0
    %666 = vmatprep.mubr.f32.mxu0 0.0
    %667 = vmatmul.mubr.f32.gmra.mrb[0].mxu0 %v600
    %v668 = vpop.f32.mrb[0].mxu0
    %v669 = vadd.f32 %v144, %v668
    %v670 = vpop.f32.mrb[0].mxu0
    %v671 = vadd.f32 %v144, %v670
    %672 = vdwg.mxu0
    %v675 = vcombine.low %v669, %v671
    %v677 = vunpack.c.l.s4 1983009808
    %v678 = vunpack.c.0.s8 %v677
    %v679 = vlaneseq
    %v680 = vshrl.u32 %v679, 7
    %v681 = vsub.s32 %v678, %v680
    %v682 = vrot.slane %v675, %v681
    %684 = vst [vmem:[#allocation2] sm:$0xf] %v682
    // Predicated region
    $region30: #{tpu_custom_call.1} parent=1 // pred_check
      _
    $region31: #{tpu_custom_call.1} parent=1 // pred_check_branch
      %686 = sbr.rel (0) target = $region33
    $region32: #{tpu_custom_call.1} parent=1 // pred_region
      %s688 = ssub.s32 64, 64
      %689 = vsyncadd [#allocation3], %s688
      %s691 = sshll.u32 [#allocation2], 4
      %s692 = int_to_ptr.vmem [resolvable:$true] %s691
      %694 = dma.vmem_to_hbm [thread:$0]  %s692, 64, %s7, [#allocation3]
    $region33: #{tpu_custom_call.1} parent=1 // pred_fallthru
      _
    // Predicated region
    $region34: #{tpu_custom_call.1} parent=1 // pred_check
      _
    $region35: #{tpu_custom_call.1} parent=1 // pred_check_branch
      %696 = sbr.rel (0) target = $region37
    $region36: #{tpu_custom_call.1} parent=1 // pred_region
      %697 = dma.done [#allocation3], 64
    $region37: #{tpu_custom_call.1} parent=1 // pred_fallthru
      _
    %698 = vsyncpa [#allocation3], 1

</llo_original>
